<compile_context>
chip_gen: v7x
topology: tpu7x:2x2x1
jax: 0.10.0
libtpu: 0.0.40
codegen_flags: <defaults>
</compile_context>

<pallas_src>
import jax
import jax.numpy as jnp
from jax.experimental import pallas as pl
from jax.experimental.pallas import tpu as pltpu

# Fixed tile sizes. f32: 512*2048*4 B = 4 MiB per block; with double-buffered
# input + output that is ~16 MiB of VMEM in flight -> fits every generation,
# including v7x (64 MiB physical / 32 MiB default scoped VMEM).
_TILE_ROWS = 512
_TILE_COLS = 2048
_VMEM_LIMIT_BYTES = 32 * 1024 * 1024


def _identity_kernel(x_ref, o_ref):
    # Elementwise identity: copy the VMEM tile straight through.
    o_ref[...] = x_ref[...]


def _lane_dense_2d_shape(n_elems: int):
    """Pick a lane-dense (rows, cols) factorization of n_elems.

    cols is the largest multiple of 128 (capped at the tile width) dividing
    n_elems, so the kernel's last dim fills the 128-lane axis. Falls back to
    (1, n_elems) when no 128-multiple divides the element count.
    """
    for cols in (_TILE_COLS, 1024, 512, 256, 128):
        if n_elems % cols == 0:
            return n_elems // cols, cols
    return 1, n_elems


@jax.jit
def no_norm(x: jnp.ndarray) -> jnp.ndarray:
    """Identity forward pass (NoNorm), routed through a Pallas TPU kernel."""
    orig_shape = x.shape
    n = x.size

    if n == 0:
        return x  # nothing to copy

    rows, cols = _lane_dense_2d_shape(n)
    x2 = x.reshape(rows, cols)

    # Fixed tiles: a block equal to the full array dim is always legal;
    # otherwise the tile is a multiple of (8, 128) and ragged edge blocks are
    # handled by the cdiv grid + Pallas masking (no full-dim fallback).
    tr = rows if rows <= _TILE_ROWS else _TILE_ROWS
    tc = cols if cols <= _TILE_COLS else _TILE_COLS

    grid = (pl.cdiv(rows, tr), pl.cdiv(cols, tc))

    out2 = pl.pallas_call(
        _identity_kernel,
        out_shape=jax.ShapeDtypeStruct((rows, cols), x.dtype),
        grid=grid,
        in_specs=[pl.BlockSpec((tr, tc), lambda i, j: (i, j))],
        out_specs=pl.BlockSpec((tr, tc), lambda i, j: (i, j)),
        # Biggest win: let XLA alias the output onto the input buffer so the
        # HBM round-trip can be elided (or at least not double-allocated).
        input_output_aliases={0: 0},
        compiler_params=pltpu.CompilerParams(
            dimension_semantics=("parallel", "parallel"),
            vmem_limit_bytes=_VMEM_LIMIT_BYTES,
        ),
    )(x2)

    return out2.reshape(orig_shape)


if __name__ == "__main__":
    key = jax.random.PRNGKey(0)
    # Small NCHW input consistent with a conv-style feature map.
    x = jax.random.normal(key, (2, 4, 16, 16), dtype=jnp.float32)

    y = no_norm(x)
    y = jax.block_until_ready(y)

    # Verify identity semantics exactly.
    assert y.shape == x.shape
    assert y.dtype == x.dtype
    assert bool(jnp.all(y == x))

    print("KERNEL_OK")
</pallas_src>

<mosaic_0001>
module attributes {stable_mosaic.version = 11 : i64} {
  func.func @_identity_kernel(%arg0: i32, %arg1: i32, %arg2: memref<1x2048xf32, #tpu.memory_space<vmem>>, %arg3: memref<1x2048xf32, #tpu.memory_space<vmem>>) attributes {dimension_semantics = [#tpu.dimension_semantics<parallel>, #tpu.dimension_semantics<parallel>], iteration_bounds = array<i64: 1, 1>, scalar_prefetch = 0 : i64, scratch_operands = 0 : i64, tpu.core_type = #tpu.core_type<tc>, window_params = [{transform_indices = @transform_0, window_bounds = array<i64: 1, 2048>}, {transform_indices = @transform_1, window_bounds = array<i64: 1, 2048>}]} {
    %c0 = arith.constant 0 : index
    %c0_0 = arith.constant 0 : index
    %0 = vector.load %arg2[%c0, %c0_0] : memref<1x2048xf32, #tpu.memory_space<vmem>>, vector<1x2048xf32>
    %c0_1 = arith.constant 0 : index
    %c0_2 = arith.constant 0 : index
    %1 = vector.load %arg3[%c0_1, %c0_2] : memref<1x2048xf32, #tpu.memory_space<vmem>>, vector<1x2048xf32>
    tpu.vector_store %arg3[%c0_1, %c0_2], %0 {strides = array<i32>} : memref<1x2048xf32, #tpu.memory_space<vmem>>, vector<1x2048xf32>,
    return
  }
  func.func @transform_0(%arg0: i32, %arg1: i32) -> (i32, i32) {
    %c0_i32 = arith.constant 0 : i32
    return %arg0, %arg1 : i32, i32
  }
  func.func @transform_1(%arg0: i32, %arg1: i32) -> (i32, i32) {
    %c0_i32 = arith.constant 0 : i32
    return %arg0, %arg1 : i32, i32
  }
}

</mosaic_0001>

<llo_original>
// kernel: no_norm.1
$region0: #{no_norm.1}
  #allocation0 [shape = 'u32[]', space=smem, size = 0x4, offset = 0x4, fixed_abs, tag = 'smem constant byte address 0x4 - core index']
  #allocation1 [shape = 'u32[144,128]{1,0:T(1,128)}', space=vmem, size = 0x12000, scoped, tag = 'internal scratch']
  %s0 = inlined_call_operand.vmem [shape: f32[1,2048], index: 0, kind: input, shape index: {}, may-alias: {0,1}]
  %s1 = inlined_call_operand.vmem [shape: f32[1,2048], index: 1, kind: output, shape index: {}, may-alias: {0,1}]
  %s2 = sld [smem:[#allocation0]]
  $region14: #{no_norm.1} parent=0
    _
  %s4 = ssub.s32 1, %s2
  %s5 = scalar_select 0, %s4, %s2
  // Predicated region
  $region2: #{no_norm.1} parent=0 // pred_check
    _
  $region3: #{no_norm.1} parent=0 // pred_check_branch
    %7 = sbr.rel (0) target = $region5
  $region4: #{no_norm.1} parent=0 // pred_region
    _
  $region5: #{no_norm.1} parent=0 // pred_fallthru
    _
  %v8 = vld [vmem:[%s0] sm:$0xff]
  %v9 = vld [vmem:[%s0 + $0x8] sm:$0xff]
  %10 = vst [vmem:[%s1] sm:$0xff] %v8
  %11 = vst [vmem:[%s1 + $0x8] sm:$0xff] %v9
  // Predicated region
  $region6: #{no_norm.1} parent=0 // pred_check
    _
  $region7: #{no_norm.1} parent=0 // pred_check_branch
    %13 = sbr.rel (0) target = $region9
  $region8: #{no_norm.1} parent=0 // pred_region
    _
  $region9: #{no_norm.1} parent=0 // pred_fallthru
    _
  // Predicated region
  $region10: #{no_norm.1} parent=0 // pred_check
    _
  $region11: #{no_norm.1} parent=0 // pred_check_branch
    %15 = sbr.rel (0) target = $region13
  $region12: #{no_norm.1} parent=0 // pred_region
    _
  $region13: #{no_norm.1} parent=0 // pred_fallthru
    _

</llo_original>
